<compile_context>
chip_gen: v7x
topology: tpu7x:2x2x1
jax: 0.10.0
libtpu: 0.0.40
codegen_flags: <defaults>
</compile_context>

<pallas_src>
import functools
import math

import jax
import jax.numpy as jnp
from jax import lax
from jax.experimental import pallas as pl
from jax.experimental.pallas import tpu as pltpu

NUM_HEADS = 12


# ----------------------------------------------------------------------------
# Linear projection kernel:  y = x @ W + b   (W pre-transposed to (Din, Dout))
# ----------------------------------------------------------------------------
def _linear_kernel(x_ref, w_ref, b_ref, o_ref):
    # Cast activations to the weight dtype (bf16 MXU path) inside the kernel;
    # accumulation stays f32.
    x = x_ref[...].astype(w_ref.dtype)
    acc = jnp.dot(x, w_ref[...], preferred_element_type=jnp.float32)
    o_ref[...] = (acc + b_ref[...].astype(jnp.float32)).astype(o_ref.dtype)


def pallas_linear(x, w_t, b, *, tm=256):
    """x: (M, Din), w_t: (Din, Dout), b: (Dout,) -> (M, Dout) in x.dtype."""
    M, Din = x.shape
    Dout = w_t.shape[1]

    # Row-tile; conservative default so the (tile + weights) footprint also
    # fits v7x's smaller VMEM. Block second-minor must be a multiple of 8 or
    # equal the full extent.
    if M <= tm:
        tm_eff = M
    else:
        tm_eff = max(8, (tm // 8) * 8)
    grid = (pl.cdiv(M, tm_eff),)

    itemsize = x.dtype.itemsize
    bytes_accessed = int(
        M * Din * itemsize + Din * Dout * w_t.dtype.itemsize
        + Dout * 4 + M * Dout * itemsize
    )
    cost = pl.CostEstimate(
        flops=2 * M * Din * Dout, transcendentals=0, bytes_accessed=bytes_accessed
    )

    return pl.pallas_call(
        _linear_kernel,
        out_shape=jax.ShapeDtypeStruct((M, Dout), x.dtype),
        grid=grid,
        in_specs=[
            pl.BlockSpec((tm_eff, Din), lambda i: (i, 0)),
            pl.BlockSpec((Din, Dout), lambda i: (0, 0)),
            pl.BlockSpec((1, Dout), lambda i: (0, 0)),
        ],
        out_specs=pl.BlockSpec((tm_eff, Dout), lambda i: (i, 0)),
        compiler_params=pltpu.CompilerParams(dimension_semantics=("parallel",)),
        cost_estimate=cost,
    )(x, w_t, b.reshape(1, Dout))


# ----------------------------------------------------------------------------
# Attention core kernel: one batch element (all H heads) per grid step.
#   scores_h = q_h @ k_h^T + mask ; probs = softmax(scores) ; out_h = probs @ v_h
# (the 1/sqrt(hd) scale is folded into the Q projection weights)
# Output is written lane-dense in (Sq, H*hd) layout -> no wrapper transpose.
# ----------------------------------------------------------------------------
def _attn_kernel(q_ref, k_ref, v_ref, *refs, compute_dtype, has_mask):
    if has_mask:
        m_ref, o_ref = refs
        mask = m_ref[0, 0].astype(jnp.float32)       # (1, Sk) or (Sq, Sk)
    else:
        (o_ref,) = refs

    H = q_ref.shape[1]
    hd = q_ref.shape[3]

    for h in range(H):                               # static unroll over heads
        q = q_ref[0, h].astype(compute_dtype)        # (Sq, hd)
        k = k_ref[0, h].astype(compute_dtype)        # (Sk, hd)
        v = v_ref[0, h].astype(compute_dtype)        # (Sk, hd)

        # q @ k^T without an explicit transpose: contract last axes on the MXU.
        s = lax.dot_general(
            q, k, (((1,), (1,)), ((), ())), preferred_element_type=jnp.float32
        )                                            # (Sq, Sk) f32
        if has_mask:
            s = s + mask                             # sublane broadcast

        s = s - jnp.max(s, axis=-1, keepdims=True)
        p = jnp.exp(s)
        p = p * pl.reciprocal(jnp.sum(p, axis=-1, keepdims=True), approx=True)
        # TODO(synk): training-mode dropout on `p` omitted (eval-mode identity).

        o = jnp.dot(p.astype(compute_dtype), v, preferred_element_type=jnp.float32)
        # Per-head VMEM slice write; the HBM writeback DMA is the dense
        # (Sq, H*hd) block regardless.
        o_ref[0, :, h * hd:(h + 1) * hd] = o.astype(o_ref.dtype)


def pallas_attention(q, k, v, mask, *, mxu_dtype=None):
    """q: (B,H,Sq,hd), k/v: (B,H,Sk,hd), mask: (B,1,mq,Sk) or None
    -> (B, Sq, H*hd)."""
    B, H, Sq, hd = q.shape
    Sk = k.shape[2]
    D = H * hd
    compute_dtype = mxu_dtype if mxu_dtype is not None else q.dtype
    has_mask = mask is not None

    in_specs = [
        pl.BlockSpec((1, H, Sq, hd), lambda b: (b, 0, 0, 0)),
        pl.BlockSpec((1, H, Sk, hd), lambda b: (b, 0, 0, 0)),
        pl.BlockSpec((1, H, Sk, hd), lambda b: (b, 0, 0, 0)),
    ]
    args = [q, k, v]
    mask_bytes = 0
    if has_mask:
        mq, mk = mask.shape[-2], mask.shape[-1]
        in_specs.append(pl.BlockSpec((1, 1, mq, mk), lambda b: (b, 0, 0, 0)))
        args.append(mask)
        mask_bytes = B * mq * mk * 4

    itemsize = q.dtype.itemsize
    cost = pl.CostEstimate(
        flops=4 * B * H * Sq * Sk * hd,              # QK^T + PV
        transcendentals=B * H * Sq * Sk,             # exp
        bytes_accessed=int((q.size + k.size + v.size + B * Sq * D) * itemsize
                           + mask_bytes),
    )

    kernel = functools.partial(
        _attn_kernel, compute_dtype=compute_dtype, has_mask=has_mask
    )
    return pl.pallas_call(
        kernel,
        out_shape=jax.ShapeDtypeStruct((B, Sq, D), q.dtype),
        grid=(B,),
        in_specs=in_specs,
        out_specs=pl.BlockSpec((1, Sq, D), lambda b: (b, 0, 0)),
        compiler_params=pltpu.CompilerParams(dimension_semantics=("parallel",)),
        cost_estimate=cost,
    )(*args)


# ----------------------------------------------------------------------------
# Module-equivalent wrapper
# ----------------------------------------------------------------------------
class BertOutAttentionPallas:
    def __init__(self, size, ctx_dim=None, key=None, mxu_dtype=jnp.bfloat16):
        if size % 12 != 0:
            raise ValueError(
                "The hidden size (%d) is not a multiple of the number of "
                "attention heads (%d)" % (size, 12)
            )
        self.num_attention_heads = NUM_HEADS
        self.attention_head_size = size // NUM_HEADS
        self.all_head_size = self.num_attention_heads * self.attention_head_size
        if ctx_dim is None:
            ctx_dim = size
        self.size = size
        self.ctx_dim = ctx_dim
        self.mxu_dtype = mxu_dtype

        key = jax.random.PRNGKey(0) if key is None else key
        ks = jax.random.split(key, 6)

        # nn.Linear convention: weight stored as (out, in), bias (out,).
        def init_w(k, fan_in, shape):
            bound = 1.0 / math.sqrt(fan_in)
            return jax.random.uniform(k, shape, jnp.float32, -bound, bound)

        self.q_w = init_w(ks[0], size, (self.all_head_size, size))
        self.q_b = init_w(ks[1], size, (self.all_head_size,))
        self.k_w = init_w(ks[2], ctx_dim, (self.all_head_size, ctx_dim))
        self.k_b = init_w(ks[3], ctx_dim, (self.all_head_size,))
        self.v_w = init_w(ks[4], ctx_dim, (self.all_head_size, ctx_dim))
        self.v_b = init_w(ks[5], ctx_dim, (self.all_head_size,))

        # Kernel-ready parameters (built once at init):
        #  - pre-transposed to (Din, Dout)
        #  - 1/sqrt(head_size) folded into the Q projection
        #  - K and V projections fused into one (Din, 2*D) matrix
        #  - weights cast to the MXU compute dtype; biases stay f32
        w_dtype = mxu_dtype if mxu_dtype is not None else jnp.float32
        scale = 1.0 / math.sqrt(self.attention_head_size)
        self.q_w_t = (self.q_w.T * scale).astype(w_dtype)
        self.q_b_s = self.q_b * scale
        self.kv_w_t = jnp.concatenate(
            [self.k_w.T, self.v_w.T], axis=1).astype(w_dtype)
        self.kv_b = jnp.concatenate([self.k_b, self.v_b], axis=0)

    def __call__(self, hidden_states, context, attention_mask=None):
        B, Sq, _ = hidden_states.shape
        Sk = context.shape[1]
        H, hd = self.num_attention_heads, self.attention_head_size
        D = self.all_head_size

        # --- projections (Pallas, M-tiled; K/V fused over the shared context) ---
        q = pallas_linear(hidden_states.reshape(B * Sq, self.size),
                          self.q_w_t, self.q_b_s)
        kv = pallas_linear(context.reshape(B * Sk, self.ctx_dim),
                           self.kv_w_t, self.kv_b)
        k, v = kv[:, :D], kv[:, D:]

        # (B, S, D) -> (B, H, S, hd)
        q = q.reshape(B, Sq, H, hd).transpose(0, 2, 1, 3)
        k = k.reshape(B, Sk, H, hd).transpose(0, 2, 1, 3)
        v = v.reshape(B, Sk, H, hd).transpose(0, 2, 1, 3)

        mask = None
        if attention_mask is not None:
            # BERT-style additive mask (B,1,1,Sk) (or (B,1,Sq,Sk)); kept in its
            # compact shape and broadcast inside the kernel.
            m = jnp.asarray(attention_mask, jnp.float32)
            mask = jnp.broadcast_to(m, (B, 1, m.shape[-2], m.shape[-1]))

        # Attention writes directly in (B, Sq, H*hd) layout -> no output transpose.
        return pallas_attention(q, k, v, mask, mxu_dtype=self.mxu_dtype)


# ----------------------------------------------------------------------------
# Pure-JAX reference (for the sanity check)
# ----------------------------------------------------------------------------
def reference_forward(mod, hidden_states, context, attention_mask):
    B, Sq, _ = hidden_states.shape
    Sk = context.shape[1]
    H, hd = mod.num_attention_heads, mod.attention_head_size
    q = hidden_states @ mod.q_w.T + mod.q_b
    k = context @ mod.k_w.T + mod.k_b
    v = context @ mod.v_w.T + mod.v_b
    q = q.reshape(B, Sq, H, hd).transpose(0, 2, 1, 3)
    k = k.reshape(B, Sk, H, hd).transpose(0, 2, 1, 3)
    v = v.reshape(B, Sk, H, hd).transpose(0, 2, 1, 3)
    s = jnp.einsum("bhqd,bhkd->bhqk", q, k) / math.sqrt(hd)
    if attention_mask is not None:
        s = s + attention_mask
    p = jax.nn.softmax(s, axis=-1)
    o = jnp.einsum("bhqk,bhkd->bhqd", p, v)
    return o.transpose(0, 2, 1, 3).reshape(B, Sq, H * hd)


if __name__ == "__main__":
    B, Sq, Sk = 2, 8, 16
    size, ctx_dim = 96, 48   # size must be a multiple of 12 -> head_size = 8

    root = jax.random.PRNGKey(0)
    k_h, k_c, k_m, k_p = jax.random.split(root, 4)

    hidden_states = jax.random.normal(k_h, (B, Sq, size), jnp.float32)
    context = jax.random.normal(k_c, (B, Sk, ctx_dim), jnp.float32)
    # Additive attention mask, BERT-style (B,1,1,Sk): 0 = keep, -10000 = drop.
    keep = (jax.random.uniform(k_m, (B, 1, 1, Sk)) > 0.2).astype(jnp.float32)
    attention_mask = (1.0 - keep) * -10000.0

    # Same PRNG key -> identical weights; one module runs the f32 MXU path
    # (tight check), the other the bf16 MXU path (perf path, looser check).
    mod_f32 = BertOutAttentionPallas(size, ctx_dim, key=k_p, mxu_dtype=jnp.float32)
    mod_bf16 = BertOutAttentionPallas(size, ctx_dim, key=k_p, mxu_dtype=jnp.bfloat16)

    ref = reference_forward(mod_f32, hidden_states, context, attention_mask)

    out_f32 = jax.block_until_ready(mod_f32(hidden_states, context, attention_mask))
    assert out_f32.shape == (B, Sq, size), out_f32.shape
    assert jnp.allclose(out_f32, ref, atol=2e-3, rtol=2e-3), \
        float(jnp.max(jnp.abs(out_f32 - ref)))

    out_bf16 = jax.block_until_ready(mod_bf16(hidden_states, context, attention_mask))
    assert jnp.allclose(out_bf16, ref, atol=5e-2, rtol=5e-2), \
        float(jnp.max(jnp.abs(out_bf16 - ref)))

    # Also exercise the no-mask path (no dummy mask DMA at all).
    out_nm = jax.block_until_ready(mod_f32(hidden_states, context, None))
    ref_nm = reference_forward(mod_f32, hidden_states, context, None)
    assert jnp.allclose(out_nm, ref_nm, atol=2e-3, rtol=2e-3), \
        float(jnp.max(jnp.abs(out_nm - ref_nm)))

    print("KERNEL_OK")
</pallas_src>

<mosaic_0001>
module attributes {stable_mosaic.version = 11 : i64} {
  func.func @_linear_kernel(%arg0: i32, %arg1: memref<16x96xf32, #tpu.memory_space<vmem>>, %arg2: memref<96x96xf32, #tpu.memory_space<vmem>>, %arg3: memref<1x96xf32, #tpu.memory_space<vmem>>, %arg4: memref<16x96xf32, #tpu.memory_space<vmem>>) attributes {dimension_semantics = [#tpu.dimension_semantics<parallel>], iteration_bounds = array<i64: 1>, scalar_prefetch = 0 : i64, scratch_operands = 0 : i64, tpu.core_type = #tpu.core_type<tc>, window_params = [{transform_indices = @transform_0, window_bounds = array<i64: 16, 96>}, {pipeline_mode = #tpu.pipeline_mode<synchronous>, transform_indices = @transform_1, window_bounds = array<i64: 96, 96>}, {pipeline_mode = #tpu.pipeline_mode<synchronous>, transform_indices = @transform_2, window_bounds = array<i64: 1, 96>}, {transform_indices = @transform_3, window_bounds = array<i64: 16, 96>}]} {
    %c0 = arith.constant 0 : index
    %c0_0 = arith.constant 0 : index
    %0 = vector.load %arg1[%c0, %c0_0] : memref<16x96xf32, #tpu.memory_space<vmem>>, vector<16x96xf32>
    %c0_1 = arith.constant 0 : index
    %c0_2 = arith.constant 0 : index
    %1 = vector.load %arg2[%c0_1, %c0_2] : memref<96x96xf32, #tpu.memory_space<vmem>>, vector<96x96xf32>
    %cst = arith.constant dense<0.000000e+00> : vector<16x96xf32>
    %2 = tpu.matmul %0, %1, %cst {dimension_numbers = #tpu.dot_dimension_numbers<[1], [0], [0], [1], [0, 0, 1, 1], [], []>} : vector<16x96xf32>, vector<96x96xf32>, vector<16x96xf32> -> vector<16x96xf32>
    %c0_3 = arith.constant 0 : index
    %c0_4 = arith.constant 0 : index
    %3 = vector.load %arg3[%c0_3, %c0_4] : memref<1x96xf32, #tpu.memory_space<vmem>>, vector<1x96xf32>
    %4 = vector.broadcast %3 : vector<1x96xf32> to vector<16x96xf32>
    %5 = arith.addf %2, %4 : vector<16x96xf32>
    %c0_5 = arith.constant 0 : index
    %c0_6 = arith.constant 0 : index
    %6 = vector.load %arg4[%c0_5, %c0_6] : memref<16x96xf32, #tpu.memory_space<vmem>>, vector<16x96xf32>
    tpu.vector_store %arg4[%c0_5, %c0_6], %5 {strides = array<i32>} : memref<16x96xf32, #tpu.memory_space<vmem>>, vector<16x96xf32>,
    return
  }
  func.func @transform_0(%arg0: i32) -> (i32, i32) {
    %c0_i32 = arith.constant 0 : i32
    %c0_i32_0 = arith.constant 0 : i32
    return %arg0, %c0_i32 : i32, i32
  }
  func.func @transform_1(%arg0: i32) -> (i32, i32) {
    %c0_i32 = arith.constant 0 : i32
    %c0_i32_0 = arith.constant 0 : i32
    %c0_i32_1 = arith.constant 0 : i32
    return %c0_i32, %c0_i32_0 : i32, i32
  }
  func.func @transform_2(%arg0: i32) -> (i32, i32) {
    %c0_i32 = arith.constant 0 : i32
    %c0_i32_0 = arith.constant 0 : i32
    %c0_i32_1 = arith.constant 0 : i32
    return %c0_i32, %c0_i32_0 : i32, i32
  }
  func.func @transform_3(%arg0: i32) -> (i32, i32) {
    %c0_i32 = arith.constant 0 : i32
    %c0_i32_0 = arith.constant 0 : i32
    return %arg0, %c0_i32 : i32, i32
  }
}

</mosaic_0001>

<llo_original>
// kernel: tpu_custom_call.1
$region0: #{tpu_custom_call.1}
  #allocation0 [shape = 'u32[]', space=smem, size = 0x4, offset = 0x4, fixed_abs, tag = 'smem constant byte address 0x4 - core index']
  #allocation1 [shape = 'u32[144,128]{1,0:T(1,128)}', space=vmem, size = 0x12000, scoped, tag = 'internal scratch']
  %s0 = inlined_call_operand.hbm [shape: f32[16,96], index: 0, kind: input, shape index: {}]
  %s1 = inlined_call_operand.hbm [shape: f32[96,96], index: 1, kind: input, shape index: {}]
  %s2 = inlined_call_operand.vmem [shape: f32[1,96], index: 2, kind: input, shape index: {}]
  %s3 = inlined_call_operand.hbm [shape: f32[16,96], index: 3, kind: output, shape index: {}]
  %s4 = sld [smem:[#allocation0]]
  $region30: #{tpu_custom_call.1} parent=0
    _
  %s6 = ssub.s32 1, %s4
  %s7 = scalar_select 0, %s6, %s4
  $region1: #{tpu_custom_call.1} parent=0
    #allocation2 [shape = 'u8[8192]{0}', space=vmem, size = 0x2000, scoped, tag = 'input window, operand 0, single buffered']
    #allocation3 [shape = 's32[1]{0}', space=sflag, size = 0x4, scoped, tag = 'scoped memory for tpu_custom_call.1']
    #allocation4 [shape = 's32[1]{0}', space=sflag, size = 0x4, scoped, tag = 'scoped memory for tpu_custom_call.1']
    #allocation5 [shape = 'u8[49152]{0}', space=vmem, size = 0xc000, scoped, tag = 'input window, operand 1, single buffered']
    #allocation6 [shape = 's32[1]{0}', space=sflag, size = 0x4, scoped, tag = 'scoped memory for tpu_custom_call.1']
    #allocation7 [shape = 'u8[8192]{0}', space=vmem, size = 0x2000, scoped, tag = 'output window, operand 0, single buffered']
    %8 = vsyncpa [#allocation3], 0
    %9 = vsyncpa [#allocation6], 0
    %10 = vsyncpa [#allocation4], 0
    // Predicated region
    $region2: #{tpu_custom_call.1} parent=1 // pred_check
      _
    $region3: #{tpu_custom_call.1} parent=1 // pred_check_branch
      %12 = sbr.rel (0) target = $region5
    $region4: #{tpu_custom_call.1} parent=1 // pred_region
      %s14 = ssub.s32 256, 256
      %15 = vsyncadd [#allocation3], %s14
      %s16 = sshll.u32 [#allocation2], 4
      %s17 = int_to_ptr.vmem [resolvable:$true] %s16
      %22 = dma.hbm_to_vmem [thread:$0]  %s0, 256, %s17, [#allocation3], 128, 128, 8
    $region5: #{tpu_custom_call.1} parent=1 // pred_fallthru
      _
    // Predicated region
    $region6: #{tpu_custom_call.1} parent=1 // pred_check
      _
    $region7: #{tpu_custom_call.1} parent=1 // pred_check_branch
      %24 = sbr.rel (0) target = $region9
    $region8: #{tpu_custom_call.1} parent=1 // pred_region
      %s26 = ssub.s32 1536, 1536
      %27 = vsyncadd [#allocation6], %s26
      %s28 = sshll.u32 [#allocation5], 4
      %s29 = int_to_ptr.vmem [resolvable:$true] %s28
      %34 = dma.hbm_to_vmem [thread:$0]  %s1, 1536, %s29, [#allocation6], 128, 128, 8
    $region9: #{tpu_custom_call.1} parent=1 // pred_fallthru
      _
    // Predicated region
    $region10: #{tpu_custom_call.1} parent=1 // pred_check
      _
    $region11: #{tpu_custom_call.1} parent=1 // pred_check_branch
      %36 = sbr.rel (0) target = $region13
    $region12: #{tpu_custom_call.1} parent=1 // pred_region
      _
    $region13: #{tpu_custom_call.1} parent=1 // pred_fallthru
      _
    // Predicated region
    $region14: #{tpu_custom_call.1} parent=1 // pred_check
      _
    $region15: #{tpu_custom_call.1} parent=1 // pred_check_branch
      %38 = sbr.rel (0) target = $region17
    $region16: #{tpu_custom_call.1} parent=1 // pred_region
      %39 = dma.done [#allocation3], 256
    $region17: #{tpu_custom_call.1} parent=1 // pred_fallthru
      _
    // Predicated region
    $region18: #{tpu_custom_call.1} parent=1 // pred_check
      _
    $region19: #{tpu_custom_call.1} parent=1 // pred_check_branch
      %41 = sbr.rel (0) target = $region21
    $region20: #{tpu_custom_call.1} parent=1 // pred_region
      %42 = dma.done [#allocation6], 1536
    $region21: #{tpu_custom_call.1} parent=1 // pred_fallthru
      _
    %v43 = vld [vmem:[#allocation2] sm:$0xff]
    %v44 = vld [vmem:[#allocation2 + $0x8] sm:$0xff]
    %v45 = vld [vmem:[#allocation5] sm:$0xff]
    %v46 = vld [vmem:[#allocation5 + $0x8] sm:$0xff]
    %v47 = vld [vmem:[#allocation5 + $0x10] sm:$0xff]
    %v48 = vld [vmem:[#allocation5 + $0x18] sm:$0xff]
    %v49 = vld [vmem:[#allocation5 + $0x20] sm:$0xff]
    %v50 = vld [vmem:[#allocation5 + $0x28] sm:$0xff]
    %v51 = vld [vmem:[#allocation5 + $0x30] sm:$0xff]
    %v52 = vld [vmem:[#allocation5 + $0x38] sm:$0xff]
    %v53 = vld [vmem:[#allocation5 + $0x40] sm:$0xff]
    %v54 = vld [vmem:[#allocation5 + $0x48] sm:$0xff]
    %v55 = vld [vmem:[#allocation5 + $0x50] sm:$0xff]
    %v56 = vld [vmem:[#allocation5 + $0x58] sm:$0xff]
    %v57 = vld [vmem:[%s2] sm:$0x1]
    %v59 = vlaneseq
    %v60 = vshrl.u32 %v59, 7
    %v61 = vsub.s32 0, %v60
    %v62 = vrot.slane %v57, %v61
    %vm64 = vcmask 785408
    %v66 = vsel %vm64, %v43, 0
    %v69 = vsel %vm64, %v44, 0
    %71 = vmatprep.subr.mxu0 0.0
    %72 = vmatpush1.msra.mxu0 %v45
    %73 = vmatprep.subr.mxu0 0.0
    %74 = vmatpush1.msra.mxu0 %v46
    %75 = vmatprep.subr.mxu0 0.0
    %76 = vmatpush1.msra.mxu0 %v47
    %77 = vmatprep.subr.mxu0 0.0
    %78 = vmatpush1.msra.mxu0 %v48
    %79 = vmatprep.subr.mxu0 0.0
    %80 = vmatpush1.msra.mxu0 %v49
    %81 = vmatprep.subr.mxu0 0.0
    %82 = vmatpush1.msra.mxu0 %v50
    %83 = vmatprep.subr.mxu0 0.0
    %84 = vmatpush1.msra.mxu0 %v51
    %85 = vmatprep.subr.mxu0 0.0
    %86 = vmatpush1.msra.mxu0 %v52
    %87 = vmatprep.subr.mxu0 0.0
    %88 = vmatpush1.msra.mxu0 %v53
    %89 = vmatprep.subr.mxu0 0.0
    %90 = vmatpush1.msra.mxu0 %v54
    %91 = vmatprep.subr.mxu0 0.0
    %92 = vmatpush1.msra.mxu0 %v55
    %93 = vmatprep.subr.mxu0 0.0
    %94 = vmatpush1.msra.mxu0 %v56
    %95 = vmatprep.subr.mxu0 0.0
    %96 = vmatpush1.msra.mxu0 0.0
    %97 = vmatprep.subr.mxu0 0.0
    %98 = vmatpush1.msra.mxu0 0.0
    %99 = vmatprep.subr.mxu0 0.0
    %100 = vmatpush1.msra.mxu0 0.0
    %101 = vmatprep.subr.mxu0 0.0
    %102 = vmatpush1.msra.mxu0 0.0
    %103 = vmatprep.subr.mxu0 0.0
    %104 = vmatpush1.msra.mxu0 0.0
    %105 = vmatprep.subr.mxu0 0.0
    %106 = vmatpush1.msra.mxu0 0.0
    %107 = vmatprep.subr.mxu0 0.0
    %108 = vmatpush1.msra.mxu0 0.0
    %109 = vmatprep.subr.mxu0 0.0
    %110 = vmatpush1.msra.mxu0 0.0
    %111 = vmatprep.subr.mxu0 0.0
    %112 = vmatpush1.msra.mxu0 0.0
    %113 = vmatprep.subr.mxu0 0.0
    %114 = vmatpush1.msra.mxu0 0.0
    %115 = vmatprep.subr.mxu0 0.0
    %116 = vmatpush1.msra.mxu0 0.0
    %117 = vmatprep.subr.mxu0 0.0
    %118 = vmatpush1.msra.mxu0 0.0
    %119 = vmatprep.subr.mxu0 0.0
    %120 = vmatpush1.msra.mxu0 0.0
    %121 = vmatprep.subr.mxu0 0.0
    %122 = vmatpush1.msra.mxu0 0.0
    %123 = vmatprep.subr.mxu0 0.0
    %124 = vmatpush1.msra.mxu0 0.0
    %125 = vmatprep.subr.mxu0 0.0
    %126 = vmatpush1.msra.mxu0 0.0
    %127 = vmatprep.subr.mxu0 0.0
    %128 = vmatpush1.msra.mxu0 0.0
    %129 = vmatprep.subr.mxu0 0.0
    %130 = vmatpush1.msra.mxu0 0.0
    %131 = vmatprep.subr.mxu0 0.0
    %132 = vmatpush1.msra.mxu0 0.0
    %133 = vmatprep.subr.mxu0 0.0
    %134 = vmatpush1.msra.mxu0 0.0
    %135 = vmatprep.mubr.f32.mxu0 0.0
    %136 = vmatmul.mubr.f32.gmra.mrb[0].mxu0 %v66
    %v137 = vpop.f32.mrb[0].mxu0
    %v138 = vadd.f32 %v62, %v137
    %v139 = vpop.f32.mrb[0].mxu0
    %140 = vmatprep.mubr.f32.mxu0 0.0
    %141 = vmatmul.mubr.f32.gmra.mrb[0].mxu0 %v69
    %v142 = vpop.f32.mrb[0].mxu0
    %v143 = vadd.f32 %v62, %v142
    %v144 = vpop.f32.mrb[0].mxu0
    %145 = vdwg.mxu0
    %146 = vst.msk [vmem:[#allocation7] sm:$0xff] %vm64, %v138
    %147 = vst.msk [vmem:[#allocation7 + $0x8] sm:$0xff] %vm64, %v143
    // Predicated region
    $region22: #{tpu_custom_call.1} parent=1 // pred_check
      _
    $region23: #{tpu_custom_call.1} parent=1 // pred_check_branch
      %149 = sbr.rel (0) target = $region25
    $region24: #{tpu_custom_call.1} parent=1 // pred_region
      %s151 = ssub.s32 256, 256
      %152 = vsyncadd [#allocation4], %s151
      %s153 = sshll.u32 [#allocation7], 4
      %s154 = int_to_ptr.vmem [resolvable:$true] %s153
      %159 = dma.vmem_to_hbm [thread:$0]  %s154, 256, %s3, [#allocation4], 128, 128, 8
    $region25: #{tpu_custom_call.1} parent=1 // pred_fallthru
      _
    // Predicated region
    $region26: #{tpu_custom_call.1} parent=1 // pred_check
      _
    $region27: #{tpu_custom_call.1} parent=1 // pred_check_branch
      %161 = sbr.rel (0) target = $region29
    $region28: #{tpu_custom_call.1} parent=1 // pred_region
      %162 = dma.done [#allocation4], 256
    $region29: #{tpu_custom_call.1} parent=1 // pred_fallthru
      _
    %163 = vsyncpa [#allocation3], 1
    %164 = vsyncpa [#allocation6], 1
    %165 = vsyncpa [#allocation4], 1

</llo_original>
